<compile_context>
chip_gen: v5e
topology: v5e:2x2
jax: 0.10.0
libtpu: 0.0.40
codegen_flags: <defaults>
</compile_context>

<pallas_src>
import functools
import math

import jax
import jax.numpy as jnp
from jax import lax
from jax.experimental import pallas as pl
from jax.experimental.pallas import tpu as pltpu


# ---------------------------------------------------------------------------
# Fused multi-head attention kernel.  Grid = (batch,), one batch element per
# grid step, all heads handled inside the step.
#   q_ref : (1, Sq, Dq)     k_ref : (1, Sk, Dk)     v_ref : (1, Sk, Dv)
#   vl_ref: (1, Sq, 1) int32 per-query valid lengths
#   w*_ref: PyTorch Linear layout (out_features, in_features)
#   o_ref : (1, Sq, num_hiddens)
# ---------------------------------------------------------------------------
def _mha_fused_kernel(q_ref, k_ref, v_ref, vl_ref,
                      wq_ref, wk_ref, wv_ref, wo_ref,
                      o_ref, *, num_heads):
    q_in = q_ref[0]                      # (Sq, Dq)
    k_in = k_ref[0]                      # (Sk, Dk)
    v_in = v_ref[0]                      # (Sk, Dv)
    vl = vl_ref[0]                       # (Sq, 1) int32

    # y = x @ W^T without materializing a transposed weight copy
    # (contract x dim 1 against w dim 1 == in_features).
    def matmul_wt(x, w):
        return lax.dot_general(x, w, (((1,), (1,)), ((), ())),
                               preferred_element_type=jnp.float32)

    q = matmul_wt(q_in, wq_ref[...])     # (Sq, H)
    k = matmul_wt(k_in, wk_ref[...])     # (Sk, H)
    v = matmul_wt(v_in, wv_ref[...])     # (Sk, H)

    sq, h = q.shape
    sk = k.shape[0]
    dh = h // num_heads
    scale = jnp.float32(1.0 / math.sqrt(dh))

    # masked_softmax semantics: columns >= valid_len get -1e6, then a plain
    # softmax over the full row (a fully masked row -> uniform weights, which
    # matches the d2l reference).
    col = lax.broadcasted_iota(jnp.int32, (sq, sk), 1)
    keep = col < vl                      # (Sq, Sk), broadcast of (Sq, 1)

    outs = []
    for hh in range(num_heads):          # static unroll; static lane slices
        qh = q[:, hh * dh:(hh + 1) * dh]             # (Sq, Dh)
        kh = k[:, hh * dh:(hh + 1) * dh]             # (Sk, Dh)
        vh = v[:, hh * dh:(hh + 1) * dh]             # (Sk, Dh)

        # scores = qh @ kh^T / sqrt(Dh), K consumed untransposed by the MXU.
        s = lax.dot_general(qh, kh, (((1,), (1,)), ((), ())),
                            preferred_element_type=jnp.float32) * scale
        s = jnp.where(keep, s, jnp.float32(-1.0e6))

        m = jnp.max(s, axis=-1, keepdims=True)
        e = jnp.exp(s - m)
        denom = jnp.sum(e, axis=-1, keepdims=True)
        attn = e * pl.reciprocal(denom, approx=True)   # EUP divide

        # dropout(p=0) == identity
        outs.append(jnp.dot(attn, vh, preferred_element_type=jnp.float32))

    out_concat = jnp.concatenate(outs, axis=-1)        # (Sq, H) merged heads
    y = matmul_wt(out_concat, wo_ref[...])             # (Sq, H)
    o_ref[0] = y.astype(o_ref.dtype)


# ---------------------------------------------------------------------------
# Forward wrapper (bias=False, dropout=0).  params are PyTorch-style weights,
# each shaped (out_features, in_features).
# ---------------------------------------------------------------------------
def multi_head_attention(queries, keys, values, valid_lens, params, num_heads):
    w_q, w_k, w_v, w_o = params
    b, sq, dq = queries.shape
    _, sk, dk = keys.shape
    _, _, dv = values.shape
    num_hiddens = w_q.shape[0]

    # valid_lens: None | (B,) | (B, Sq)  ->  (B, Sq, 1) int32
    # (d2l repeats per head; heads share the batch's lengths, so handling all
    #  heads of a batch in one grid step is equivalent.)
    if valid_lens is None:
        vl = jnp.full((b, sq), sk, dtype=jnp.int32)
    else:
        vl = valid_lens.astype(jnp.int32)
        if vl.ndim == 1:
            vl = jnp.broadcast_to(vl[:, None], (b, sq))
    vl = vl.reshape(b, sq, 1)

    kernel = functools.partial(_mha_fused_kernel, num_heads=num_heads)

    grid_spec = pltpu.PrefetchScalarGridSpec(
        num_scalar_prefetch=0,
        grid=(b,),
        in_specs=[
            pl.BlockSpec((1, sq, dq), lambda i: (i, 0, 0)),
            pl.BlockSpec((1, sk, dk), lambda i: (i, 0, 0)),
            pl.BlockSpec((1, sk, dv), lambda i: (i, 0, 0)),
            pl.BlockSpec((1, sq, 1), lambda i: (i, 0, 0)),
            pl.BlockSpec((num_hiddens, dq), lambda i: (0, 0)),
            pl.BlockSpec((num_hiddens, dk), lambda i: (0, 0)),
            pl.BlockSpec((num_hiddens, dv), lambda i: (0, 0)),
            pl.BlockSpec((num_hiddens, num_hiddens), lambda i: (0, 0)),
        ],
        out_specs=pl.BlockSpec((1, sq, num_hiddens), lambda i: (i, 0, 0)),
    )

    return pl.pallas_call(
        kernel,
        grid_spec=grid_spec,
        out_shape=jax.ShapeDtypeStruct((b, sq, num_hiddens), queries.dtype),
        compiler_params=pltpu.CompilerParams(
            dimension_semantics=("parallel",)),   # batch axis -> both TCs on v7x
    )(queries, keys, values, vl, w_q, w_k, w_v, w_o)


# ---------------------------------------------------------------------------
# Pure-JAX reference (mirrors the PyTorch module) for correctness checking.
# ---------------------------------------------------------------------------
def transpose_qkv(x, num_heads):
    b, s, h = x.shape
    x = x.reshape(b, s, num_heads, h // num_heads)
    x = jnp.transpose(x, (0, 2, 1, 3))
    return x.reshape(b * num_heads, s, h // num_heads)


def transpose_output(x, num_heads):
    bh, s, dh = x.shape
    x = x.reshape(bh // num_heads, num_heads, s, dh)
    x = jnp.transpose(x, (0, 2, 1, 3))
    return x.reshape(bh // num_heads, s, num_heads * dh)


def multi_head_attention_ref(queries, keys, values, valid_lens, params, num_heads):
    w_q, w_k, w_v, w_o = params
    b, sq, _ = queries.shape
    sk = keys.shape[1]
    q = transpose_qkv(queries @ w_q.T, num_heads)
    k = transpose_qkv(keys @ w_k.T, num_heads)
    v = transpose_qkv(values @ w_v.T, num_heads)
    if valid_lens is None:
        vl = jnp.full((b, sq), sk, jnp.int32)
    else:
        vl = valid_lens.astype(jnp.int32)
        if vl.ndim == 1:
            vl = jnp.broadcast_to(vl[:, None], (b, sq))
    vl = jnp.repeat(vl, num_heads, axis=0)           # (B*nH, Sq)
    d = q.shape[-1]
    scores = jnp.einsum("bqd,bkd->bqk", q, k) / math.sqrt(d)
    col = jnp.arange(sk)[None, None, :]
    scores = jnp.where(col < vl[:, :, None], scores, -1.0e6)
    attn = jax.nn.softmax(scores, axis=-1)
    out = jnp.einsum("bqk,bkd->bqd", attn, v)
    out = transpose_output(out, num_heads)
    return out @ w_o.T


if __name__ == "__main__":
    batch, seq_q, seq_kv = 2, 8, 8
    key_size = query_size = value_size = 32
    num_hiddens, num_heads = 32, 4

    root = jax.random.PRNGKey(0)
    kq, kk, kv, kwq, kwk, kwv, kwo, kvl = jax.random.split(root, 8)

    queries = jax.random.normal(kq, (batch, seq_q, query_size), jnp.float32)
    keys = jax.random.normal(kk, (batch, seq_kv, key_size), jnp.float32)
    values = jax.random.normal(kv, (batch, seq_kv, value_size), jnp.float32)
    valid_lens_1d = jnp.array([3, 6], dtype=jnp.int32)                  # (B,)
    valid_lens_2d = jax.random.randint(kvl, (batch, seq_q), 1, seq_kv + 1)  # (B, Sq)

    def init_w(key, out_f, in_f):
        bound = 1.0 / math.sqrt(in_f)
        return jax.random.uniform(key, (out_f, in_f), jnp.float32, -bound, bound)

    params = (
        init_w(kwq, num_hiddens, query_size),
        init_w(kwk, num_hiddens, key_size),
        init_w(kwv, num_hiddens, value_size),
        init_w(kwo, num_hiddens, num_hiddens),
    )

    # 1-D (per-batch) valid_lens
    out1 = multi_head_attention(queries, keys, values, valid_lens_1d, params, num_heads)
    out1 = jax.block_until_ready(out1)
    ref1 = multi_head_attention_ref(queries, keys, values, valid_lens_1d, params, num_heads)
    assert out1.shape == (batch, seq_q, num_hiddens)
    assert jnp.allclose(out1, ref1, atol=5e-3, rtol=5e-3), "mismatch (1-D valid_lens)"

    # 2-D (per-query) valid_lens
    out2 = multi_head_attention(queries, keys, values, valid_lens_2d, params, num_heads)
    out2 = jax.block_until_ready(out2)
    ref2 = multi_head_attention_ref(queries, keys, values, valid_lens_2d, params, num_heads)
    assert jnp.allclose(out2, ref2, atol=5e-3, rtol=5e-3), "mismatch (2-D valid_lens)"

    print("KERNEL_OK")
</pallas_src>

<mosaic_0001>
module attributes {stable_mosaic.version = 11 : i64} {
  func.func @_mha_fused_kernel(%arg0: i32, %arg1: memref<1x8x32xf32, #tpu.memory_space<vmem>>, %arg2: memref<1x8x32xf32, #tpu.memory_space<vmem>>, %arg3: memref<1x8x32xf32, #tpu.memory_space<vmem>>, %arg4: memref<1x8x1xi32, #tpu.memory_space<vmem>>, %arg5: memref<32x32xf32, #tpu.memory_space<vmem>>, %arg6: memref<32x32xf32, #tpu.memory_space<vmem>>, %arg7: memref<32x32xf32, #tpu.memory_space<vmem>>, %arg8: memref<32x32xf32, #tpu.memory_space<vmem>>, %arg9: memref<1x8x32xf32, #tpu.memory_space<vmem>>) attributes {dimension_semantics = [#tpu.dimension_semantics<parallel>], iteration_bounds = array<i64: 2>, scalar_prefetch = 0 : i64, scratch_operands = 0 : i64, tpu.core_type = #tpu.core_type<tc>, window_params = [{transform_indices = @transform_0, window_bounds = array<i64: 1, 8, 32>}, {transform_indices = @transform_1, window_bounds = array<i64: 1, 8, 32>}, {transform_indices = @transform_2, window_bounds = array<i64: 1, 8, 32>}, {transform_indices = @transform_3, window_bounds = array<i64: 1, 8, 1>}, {pipeline_mode = #tpu.pipeline_mode<synchronous>, transform_indices = @transform_4, window_bounds = array<i64: 32, 32>}, {pipeline_mode = #tpu.pipeline_mode<synchronous>, transform_indices = @transform_5, window_bounds = array<i64: 32, 32>}, {pipeline_mode = #tpu.pipeline_mode<synchronous>, transform_indices = @transform_6, window_bounds = array<i64: 32, 32>}, {pipeline_mode = #tpu.pipeline_mode<synchronous>, transform_indices = @transform_7, window_bounds = array<i64: 32, 32>}, {transform_indices = @transform_8, window_bounds = array<i64: 1, 8, 32>}]} {
    %c0 = arith.constant 0 : index
    %c0_0 = arith.constant 0 : index
    %c0_1 = arith.constant 0 : index
    %0 = vector.load %arg1[%c0, %c0_0, %c0_1] : memref<1x8x32xf32, #tpu.memory_space<vmem>>, vector<1x8x32xf32>
    %1 = vector.shape_cast %0 : vector<1x8x32xf32> to vector<8x32xf32>
    %c0_2 = arith.constant 0 : index
    %c0_3 = arith.constant 0 : index
    %c0_4 = arith.constant 0 : index
    %2 = vector.load %arg2[%c0_2, %c0_3, %c0_4] : memref<1x8x32xf32, #tpu.memory_space<vmem>>, vector<1x8x32xf32>
    %3 = vector.shape_cast %2 : vector<1x8x32xf32> to vector<8x32xf32>
    %c0_5 = arith.constant 0 : index
    %c0_6 = arith.constant 0 : index
    %c0_7 = arith.constant 0 : index
    %4 = vector.load %arg3[%c0_5, %c0_6, %c0_7] : memref<1x8x32xf32, #tpu.memory_space<vmem>>, vector<1x8x32xf32>
    %5 = vector.shape_cast %4 : vector<1x8x32xf32> to vector<8x32xf32>
    %c0_8 = arith.constant 0 : index
    %c0_9 = arith.constant 0 : index
    %c0_10 = arith.constant 0 : index
    %6 = vector.load %arg4[%c0_8, %c0_9, %c0_10] : memref<1x8x1xi32, #tpu.memory_space<vmem>>, vector<1x8x1xi32>
    %7 = vector.shape_cast %6 : vector<1x8x1xi32> to vector<8x1xi32>
    %c0_11 = arith.constant 0 : index
    %c0_12 = arith.constant 0 : index
    %8 = vector.load %arg5[%c0_11, %c0_12] : memref<32x32xf32, #tpu.memory_space<vmem>>, vector<32x32xf32>
    %cst = arith.constant dense<0.000000e+00> : vector<8x32xf32>
    %9 = tpu.matmul %1, %8, %cst {dimension_numbers = #tpu.dot_dimension_numbers<[1], [1], [0], [0], [0, 0, 1, 0], [], []>} : vector<8x32xf32>, vector<32x32xf32>, vector<8x32xf32> -> vector<8x32xf32>
    %c0_13 = arith.constant 0 : index
    %c0_14 = arith.constant 0 : index
    %10 = vector.load %arg6[%c0_13, %c0_14] : memref<32x32xf32, #tpu.memory_space<vmem>>, vector<32x32xf32>
    %cst_15 = arith.constant dense<0.000000e+00> : vector<8x32xf32>
    %11 = tpu.matmul %3, %10, %cst_15 {dimension_numbers = #tpu.dot_dimension_numbers<[1], [1], [0], [0], [0, 0, 1, 0], [], []>} : vector<8x32xf32>, vector<32x32xf32>, vector<8x32xf32> -> vector<8x32xf32>
    %c0_16 = arith.constant 0 : index
    %c0_17 = arith.constant 0 : index
    %12 = vector.load %arg7[%c0_16, %c0_17] : memref<32x32xf32, #tpu.memory_space<vmem>>, vector<32x32xf32>
    %cst_18 = arith.constant dense<0.000000e+00> : vector<8x32xf32>
    %13 = tpu.matmul %5, %12, %cst_18 {dimension_numbers = #tpu.dot_dimension_numbers<[1], [1], [0], [0], [0, 0, 1, 0], [], []>} : vector<8x32xf32>, vector<32x32xf32>, vector<8x32xf32> -> vector<8x32xf32>
    %14 = tpu.iota {dimensions = array<i32: 1>} : vector<8x8xi32>
    %15 = vector.broadcast %7 : vector<8x1xi32> to vector<8x8xi32>
    %16 = arith.cmpi slt, %14, %15 : vector<8x8xi32>
    %17 = vector.extract_strided_slice %9 {offsets = [0, 0], sizes = [8, 8], strides = [1, 1]} : vector<8x32xf32> to vector<8x8xf32>
    %18 = vector.extract_strided_slice %11 {offsets = [0, 0], sizes = [8, 8], strides = [1, 1]} : vector<8x32xf32> to vector<8x8xf32>
    %19 = vector.extract_strided_slice %13 {offsets = [0, 0], sizes = [8, 8], strides = [1, 1]} : vector<8x32xf32> to vector<8x8xf32>
    %cst_19 = arith.constant dense<0.000000e+00> : vector<8x8xf32>
    %20 = tpu.matmul %17, %18, %cst_19 {dimension_numbers = #tpu.dot_dimension_numbers<[1], [1], [0], [0], [0, 0, 1, 0], [], []>} : vector<8x8xf32>, vector<8x8xf32>, vector<8x8xf32> -> vector<8x8xf32>
    %cst_20 = arith.constant 0.353553385 : f32
    %21 = vector.broadcast %cst_20 : f32 to vector<8x8xf32>
    %22 = arith.mulf %20, %21 : vector<8x8xf32>
    %cst_21 = arith.constant -1.000000e+06 : f32
    %23 = vector.broadcast %cst_21 : f32 to vector<8x8xf32>
    %24 = arith.select %16, %22, %23 : vector<8x8xi1>, vector<8x8xf32>
    %cst_22 = arith.constant dense<0xFF800000> : vector<8xf32>
    %25 = vector.multi_reduction <maximumf>, %24, %cst_22 [1] : vector<8x8xf32> to vector<8xf32>
    %26 = vector.shape_cast %25 : vector<8xf32> to vector<8x1xf32>
    %27 = vector.broadcast %26 : vector<8x1xf32> to vector<8x8xf32>
    %28 = arith.subf %24, %27 : vector<8x8xf32>
    %29 = math.exp %28 : vector<8x8xf32>
    %cst_23 = arith.constant dense<0.000000e+00> : vector<8xf32>
    %30 = vector.multi_reduction <add>, %29, %cst_23 [1] : vector<8x8xf32> to vector<8xf32>
    %31 = vector.shape_cast %30 : vector<8xf32> to vector<8x1xf32>
    %32 = tpu.reciprocal %31 {approx = true} : vector<8x1xf32> -> vector<8x1xf32>
    %33 = vector.broadcast %32 : vector<8x1xf32> to vector<8x8xf32>
    %34 = arith.mulf %29, %33 : vector<8x8xf32>
    %cst_24 = arith.constant dense<0.000000e+00> : vector<8x8xf32>
    %35 = tpu.matmul %34, %19, %cst_24 {dimension_numbers = #tpu.dot_dimension_numbers<[1], [0], [0], [1], [0, 0, 1, 1], [], []>} : vector<8x8xf32>, vector<8x8xf32>, vector<8x8xf32> -> vector<8x8xf32>
    %36 = vector.extract_strided_slice %9 {offsets = [0, 8], sizes = [8, 8], strides = [1, 1]} : vector<8x32xf32> to vector<8x8xf32>
    %37 = vector.extract_strided_slice %11 {offsets = [0, 8], sizes = [8, 8], strides = [1, 1]} : vector<8x32xf32> to vector<8x8xf32>
    %38 = vector.extract_strided_slice %13 {offsets = [0, 8], sizes = [8, 8], strides = [1, 1]} : vector<8x32xf32> to vector<8x8xf32>
    %cst_25 = arith.constant dense<0.000000e+00> : vector<8x8xf32>
    %39 = tpu.matmul %36, %37, %cst_25 {dimension_numbers = #tpu.dot_dimension_numbers<[1], [1], [0], [0], [0, 0, 1, 0], [], []>} : vector<8x8xf32>, vector<8x8xf32>, vector<8x8xf32> -> vector<8x8xf32>
    %cst_26 = arith.constant 0.353553385 : f32
    %40 = vector.broadcast %cst_26 : f32 to vector<8x8xf32>
    %41 = arith.mulf %39, %40 : vector<8x8xf32>
    %cst_27 = arith.constant -1.000000e+06 : f32
    %42 = vector.broadcast %cst_27 : f32 to vector<8x8xf32>
    %43 = arith.select %16, %41, %42 : vector<8x8xi1>, vector<8x8xf32>
    %cst_28 = arith.constant dense<0xFF800000> : vector<8xf32>
    %44 = vector.multi_reduction <maximumf>, %43, %cst_28 [1] : vector<8x8xf32> to vector<8xf32>
    %45 = vector.shape_cast %44 : vector<8xf32> to vector<8x1xf32>
    %46 = vector.broadcast %45 : vector<8x1xf32> to vector<8x8xf32>
    %47 = arith.subf %43, %46 : vector<8x8xf32>
    %48 = math.exp %47 : vector<8x8xf32>
    %cst_29 = arith.constant dense<0.000000e+00> : vector<8xf32>
    %49 = vector.multi_reduction <add>, %48, %cst_29 [1] : vector<8x8xf32> to vector<8xf32>
    %50 = vector.shape_cast %49 : vector<8xf32> to vector<8x1xf32>
    %51 = tpu.reciprocal %50 {approx = true} : vector<8x1xf32> -> vector<8x1xf32>
    %52 = vector.broadcast %51 : vector<8x1xf32> to vector<8x8xf32>
    %53 = arith.mulf %48, %52 : vector<8x8xf32>
    %cst_30 = arith.constant dense<0.000000e+00> : vector<8x8xf32>
    %54 = tpu.matmul %53, %38, %cst_30 {dimension_numbers = #tpu.dot_dimension_numbers<[1], [0], [0], [1], [0, 0, 1, 1], [], []>} : vector<8x8xf32>, vector<8x8xf32>, vector<8x8xf32> -> vector<8x8xf32>
    %55 = vector.extract_strided_slice %9 {offsets = [0, 16], sizes = [8, 8], strides = [1, 1]} : vector<8x32xf32> to vector<8x8xf32>
    %56 = vector.extract_strided_slice %11 {offsets = [0, 16], sizes = [8, 8], strides = [1, 1]} : vector<8x32xf32> to vector<8x8xf32>
    %57 = vector.extract_strided_slice %13 {offsets = [0, 16], sizes = [8, 8], strides = [1, 1]} : vector<8x32xf32> to vector<8x8xf32>
    %cst_31 = arith.constant dense<0.000000e+00> : vector<8x8xf32>
    %58 = tpu.matmul %55, %56, %cst_31 {dimension_numbers = #tpu.dot_dimension_numbers<[1], [1], [0], [0], [0, 0, 1, 0], [], []>} : vector<8x8xf32>, vector<8x8xf32>, vector<8x8xf32> -> vector<8x8xf32>
    %cst_32 = arith.constant 0.353553385 : f32
    %59 = vector.broadcast %cst_32 : f32 to vector<8x8xf32>
    %60 = arith.mulf %58, %59 : vector<8x8xf32>
    %cst_33 = arith.constant -1.000000e+06 : f32
    %61 = vector.broadcast %cst_33 : f32 to vector<8x8xf32>
    %62 = arith.select %16, %60, %61 : vector<8x8xi1>, vector<8x8xf32>
    %cst_34 = arith.constant dense<0xFF800000> : vector<8xf32>
    %63 = vector.multi_reduction <maximumf>, %62, %cst_34 [1] : vector<8x8xf32> to vector<8xf32>
    %64 = vector.shape_cast %63 : vector<8xf32> to vector<8x1xf32>
    %65 = vector.broadcast %64 : vector<8x1xf32> to vector<8x8xf32>
    %66 = arith.subf %62, %65 : vector<8x8xf32>
    %67 = math.exp %66 : vector<8x8xf32>
    %cst_35 = arith.constant dense<0.000000e+00> : vector<8xf32>
    %68 = vector.multi_reduction <add>, %67, %cst_35 [1] : vector<8x8xf32> to vector<8xf32>
    %69 = vector.shape_cast %68 : vector<8xf32> to vector<8x1xf32>
    %70 = tpu.reciprocal %69 {approx = true} : vector<8x1xf32> -> vector<8x1xf32>
    %71 = vector.broadcast %70 : vector<8x1xf32> to vector<8x8xf32>
    %72 = arith.mulf %67, %71 : vector<8x8xf32>
    %cst_36 = arith.constant dense<0.000000e+00> : vector<8x8xf32>
    %73 = tpu.matmul %72, %57, %cst_36 {dimension_numbers = #tpu.dot_dimension_numbers<[1], [0], [0], [1], [0, 0, 1, 1], [], []>} : vector<8x8xf32>, vector<8x8xf32>, vector<8x8xf32> -> vector<8x8xf32>
    %74 = vector.extract_strided_slice %9 {offsets = [0, 24], sizes = [8, 8], strides = [1, 1]} : vector<8x32xf32> to vector<8x8xf32>
    %75 = vector.extract_strided_slice %11 {offsets = [0, 24], sizes = [8, 8], strides = [1, 1]} : vector<8x32xf32> to vector<8x8xf32>
    %76 = vector.extract_strided_slice %13 {offsets = [0, 24], sizes = [8, 8], strides = [1, 1]} : vector<8x32xf32> to vector<8x8xf32>
    %cst_37 = arith.constant dense<0.000000e+00> : vector<8x8xf32>
    %77 = tpu.matmul %74, %75, %cst_37 {dimension_numbers = #tpu.dot_dimension_numbers<[1], [1], [0], [0], [0, 0, 1, 0], [], []>} : vector<8x8xf32>, vector<8x8xf32>, vector<8x8xf32> -> vector<8x8xf32>
    %cst_38 = arith.constant 0.353553385 : f32
    %78 = vector.broadcast %cst_38 : f32 to vector<8x8xf32>
    %79 = arith.mulf %77, %78 : vector<8x8xf32>
    %cst_39 = arith.constant -1.000000e+06 : f32
    %80 = vector.broadcast %cst_39 : f32 to vector<8x8xf32>
    %81 = arith.select %16, %79, %80 : vector<8x8xi1>, vector<8x8xf32>
    %cst_40 = arith.constant dense<0xFF800000> : vector<8xf32>
    %82 = vector.multi_reduction <maximumf>, %81, %cst_40 [1] : vector<8x8xf32> to vector<8xf32>
    %83 = vector.shape_cast %82 : vector<8xf32> to vector<8x1xf32>
    %84 = vector.broadcast %83 : vector<8x1xf32> to vector<8x8xf32>
    %85 = arith.subf %81, %84 : vector<8x8xf32>
    %86 = math.exp %85 : vector<8x8xf32>
    %cst_41 = arith.constant dense<0.000000e+00> : vector<8xf32>
    %87 = vector.multi_reduction <add>, %86, %cst_41 [1] : vector<8x8xf32> to vector<8xf32>
    %88 = vector.shape_cast %87 : vector<8xf32> to vector<8x1xf32>
    %89 = tpu.reciprocal %88 {approx = true} : vector<8x1xf32> -> vector<8x1xf32>
    %90 = vector.broadcast %89 : vector<8x1xf32> to vector<8x8xf32>
    %91 = arith.mulf %86, %90 : vector<8x8xf32>
    %cst_42 = arith.constant dense<0.000000e+00> : vector<8x8xf32>
    %92 = tpu.matmul %91, %76, %cst_42 {dimension_numbers = #tpu.dot_dimension_numbers<[1], [0], [0], [1], [0, 0, 1, 1], [], []>} : vector<8x8xf32>, vector<8x8xf32>, vector<8x8xf32> -> vector<8x8xf32>
    %93 = tpu.concatenate %35, %54, %73, %92 in 1 : vector<8x8xf32>, vector<8x8xf32>, vector<8x8xf32>, vector<8x8xf32> -> vector<8x32xf32>
    %c0_43 = arith.constant 0 : index
    %c0_44 = arith.constant 0 : index
    %94 = vector.load %arg8[%c0_43, %c0_44] : memref<32x32xf32, #tpu.memory_space<vmem>>, vector<32x32xf32>
    %cst_45 = arith.constant dense<0.000000e+00> : vector<8x32xf32>
    %95 = tpu.matmul %93, %94, %cst_45 {dimension_numbers = #tpu.dot_dimension_numbers<[1], [1], [0], [0], [0, 0, 1, 0], [], []>} : vector<8x32xf32>, vector<32x32xf32>, vector<8x32xf32> -> vector<8x32xf32>
    %c0_46 = arith.constant 0 : index
    %c0_47 = arith.constant 0 : index
    %c0_48 = arith.constant 0 : index
    %96 = vector.load %arg9[%c0_46, %c0_47, %c0_48] : memref<1x8x32xf32, #tpu.memory_space<vmem>>, vector<1x8x32xf32>
    %97 = vector.shape_cast %96 : vector<1x8x32xf32> to vector<8x32xf32>
    %98 = vector.shape_cast %95 : vector<8x32xf32> to vector<1x8x32xf32>
    tpu.vector_store %arg9[%c0_46, %c0_47, %c0_48], %98 {strides = array<i32>} : memref<1x8x32xf32, #tpu.memory_space<vmem>>, vector<1x8x32xf32>,
    return
  }
  func.func @transform_0(%arg0: i32) -> (i32, i32, i32) {
    %c0_i32 = arith.constant 0 : i32
    %c0_i32_0 = arith.constant 0 : i32
    %c0_i32_1 = arith.constant 0 : i32
    return %arg0, %c0_i32, %c0_i32_0 : i32, i32, i32
  }
  func.func @transform_1(%arg0: i32) -> (i32, i32, i32) {
    %c0_i32 = arith.constant 0 : i32
    %c0_i32_0 = arith.constant 0 : i32
    %c0_i32_1 = arith.constant 0 : i32
    return %arg0, %c0_i32, %c0_i32_0 : i32, i32, i32
  }
  func.func @transform_2(%arg0: i32) -> (i32, i32, i32) {
    %c0_i32 = arith.constant 0 : i32
    %c0_i32_0 = arith.constant 0 : i32
    %c0_i32_1 = arith.constant 0 : i32
    return %arg0, %c0_i32, %c0_i32_0 : i32, i32, i32
  }
  func.func @transform_3(%arg0: i32) -> (i32, i32, i32) {
    %c0_i32 = arith.constant 0 : i32
    %c0_i32_0 = arith.constant 0 : i32
    %c0_i32_1 = arith.constant 0 : i32
    return %arg0, %c0_i32, %c0_i32_0 : i32, i32, i32
  }
  func.func @transform_4(%arg0: i32) -> (i32, i32) {
    %c0_i32 = arith.constant 0 : i32
    %c0_i32_0 = arith.constant 0 : i32
    %c0_i32_1 = arith.constant 0 : i32
    return %c0_i32, %c0_i32_0 : i32, i32
  }
  func.func @transform_5(%arg0: i32) -> (i32, i32) {
    %c0_i32 = arith.constant 0 : i32
    %c0_i32_0 = arith.constant 0 : i32
    %c0_i32_1 = arith.constant 0 : i32
    return %c0_i32, %c0_i32_0 : i32, i32
  }
  func.func @transform_6(%arg0: i32) -> (i32, i32) {
    %c0_i32 = arith.constant 0 : i32
    %c0_i32_0 = arith.constant 0 : i32
    %c0_i32_1 = arith.constant 0 : i32
    return %c0_i32, %c0_i32_0 : i32, i32
  }
  func.func @transform_7(%arg0: i32) -> (i32, i32) {
    %c0_i32 = arith.constant 0 : i32
    %c0_i32_0 = arith.constant 0 : i32
    %c0_i32_1 = arith.constant 0 : i32
    return %c0_i32, %c0_i32_0 : i32, i32
  }
  func.func @transform_8(%arg0: i32) -> (i32, i32, i32) {
    %c0_i32 = arith.constant 0 : i32
    %c0_i32_0 = arith.constant 0 : i32
    %c0_i32_1 = arith.constant 0 : i32
    return %arg0, %c0_i32, %c0_i32_0 : i32, i32, i32
  }
}

</mosaic_0001>

<llo_original>
// kernel: tpu_custom_call.1
$region0: #{tpu_custom_call.1}
  #allocation0 [shape = 'u32[]', space=smem, size = 0x4, offset = 0x4, fixed_abs, tag = 'smem constant byte address 0x4 - core index']
  #allocation1 [shape = 'u32[72,128]{1,0:T(1,128)}', space=vmem, size = 0x9000, scoped, tag = 'internal scratch']
  %s0 = inlined_call_operand.vmem [shape: f32[2,8,32], index: 0, kind: input, shape index: {}]
  %s1 = inlined_call_operand.hbm [shape: f32[2,8,32], index: 1, kind: input, shape index: {}]
  %s2 = inlined_call_operand.hbm [shape: f32[2,8,32], index: 2, kind: input, shape index: {}]
  %s3 = inlined_call_operand.vmem [shape: s32[2,8,1], index: 3, kind: input, shape index: {}]
  %s4 = inlined_call_operand.hbm [shape: f32[32,32], index: 4, kind: input, shape index: {}]
  %s5 = inlined_call_operand.hbm [shape: f32[32,32], index: 5, kind: input, shape index: {}]
  %s6 = inlined_call_operand.hbm [shape: f32[32,32], index: 6, kind: input, shape index: {}]
  %s7 = inlined_call_operand.hbm [shape: f32[32,32], index: 7, kind: input, shape index: {}]
  %s8 = inlined_call_operand.hbm [shape: f32[2,8,32], index: 8, kind: output, shape index: {}]
  %s9 = sld [smem:[#allocation0]]
  $region89: #{tpu_custom_call.1} parent=0
    _
  %s11 = ssub.s32 1, %s9
  %s12 = scalar_select 0, %s11, %s9
  $region1: #{tpu_custom_call.1} parent=0
    #allocation2 [shape = 'u8[8192]{0}', space=vmem, size = 0x2000, scoped, tag = 'input window, operand 1']
    #allocation3 [shape = 's32[2]{0}', space=sflag, size = 0x8, scoped, tag = 'scoped memory for tpu_custom_call.1']
    #allocation4 [shape = 's32[2]{0}', space=sflag, size = 0x8, scoped, tag = 'scoped memory for tpu_custom_call.1']
    #allocation5 [shape = 'u8[8192]{0}', space=vmem, size = 0x2000, scoped, tag = 'input window, operand 2']
    #allocation6 [shape = 's32[2]{0}', space=sflag, size = 0x8, scoped, tag = 'scoped memory for tpu_custom_call.1']
    #allocation7 [shape = 'u8[16384]{0}', space=vmem, size = 0x4000, scoped, tag = 'input window, operand 4, single buffered']
    #allocation8 [shape = 'u8[16384]{0}', space=vmem, size = 0x4000, scoped, tag = 'input window, operand 5, single buffered']
    #allocation9 [shape = 's32[1]{0}', space=sflag, size = 0x4, scoped, tag = 'scoped memory for tpu_custom_call.1']
    #allocation10 [shape = 'u8[16384]{0}', space=vmem, size = 0x4000, scoped, tag = 'input window, operand 6, single buffered']
    #allocation11 [shape = 'u8[16384]{0}', space=vmem, size = 0x4000, scoped, tag = 'input window, operand 7, single buffered']
    #allocation12 [shape = 's32[1]{0}', space=sflag, size = 0x4, scoped, tag = 'scoped memory for tpu_custom_call.1']
    #allocation13 [shape = 'u8[8192]{0}', space=vmem, size = 0x2000, scoped, tag = 'output window, operand 0']
    %13 = vsyncpa [#allocation3], 0
    %s14 = scalar_lea.sflag [#allocation3], 1
    %15 = vsyncpa %s14, 0
    %16 = vsyncpa [#allocation6], 0
    %s17 = scalar_lea.sflag [#allocation6], 1
    %18 = vsyncpa %s17, 0
    %19 = vsyncpa [#allocation9], 0
    %20 = vsyncpa [#allocation12], 0
    %21 = vsyncpa [#allocation4], 0
    %s22 = scalar_lea.sflag [#allocation4], 1
    %23 = vsyncpa %s22, 0
    loop: start=0, step=1, limit=4
    $region2: #{tpu_custom_call.1} parent=1 // loop_pre_header
      _
    $region3: #{tpu_custom_call.1} parent=1 // loop_header
      %s25 = sphi 0, %s29
      %p26 = scmp.ge.s32.totalorder %s25, 4
      %s35 = sphi 0, %s37
      %s38 = sphi 0, %s35
      %s39 = sphi 0, %s38
      %s55 = sphi 0, %s39
      %s61 = sphi 0, %s63
      %s64 = sphi 0, %s61
      %s65 = sphi 0, %s64
      %s81 = sphi 0, %s65
      %s87 = sphi 0, %s89
      %s90 = sphi 0, %s87
      %s91 = sphi 0, %s90
      %s107 = sphi 0, %s91
      %s113 = sphi 0, %s115
      %s116 = sphi 0, %s113
      %s117 = sphi 0, %s116
      %s133 = sphi 0, %s117
      %s137 = sphi 0, %s137
      %s139 = sphi 0, %s137
      %s140 = sphi 0, %s139
      %s154 = sphi 0, %s140
      %s158 = sphi 0, %s158
      %s160 = sphi 0, %s158
      %s161 = sphi 0, %s160
      %s175 = sphi 0, %s161
      %s179 = sphi 0, %s179
      %s181 = sphi 0, %s179
      %s182 = sphi 0, %s181
      %s196 = sphi 0, %s182
      %s200 = sphi 0, %s200
      %s202 = sphi 0, %s200
      %s203 = sphi 0, %s202
      %s217 = sphi 0, %s203
      %s223 = sphi 0, %s225
      %s226 = sphi 0, %s223
      %s227 = sphi 0, %s226
      %s243 = sphi 0, %s227
    $region4: #{tpu_custom_call.1} parent=1 // loop_header_branch
      %28 = sbr.rel (%p26) target = $region8
    $region5: #{tpu_custom_call.1} parent=1 // loop_body
      %s30 = ssub.s32 %s25, 1
      %s31 = ssub.s32 %s25, 2
      %s32 = sadd.s32 %s25, 1
      %s33 = ssub.s32 %s25, %s32
      %p34 = scmp.eq.s32.totalorder %s33, 0
      %s36 = sadd.s32 %s35, 1
      %s37 = scalar_select %p34, %s35, %s36
      %p40 = pneg %p34
      %p41 = scmp.eq.s32.totalorder %s25, 1
      %p42 = por %p40, %p41
      %p43 = scmp.ne.s32.totalorder %s35, %s38
      %p44 = scmp.eq.s32.totalorder %s25, 0
      %p45 = por %p43, %p44
      %p46 = scmp.ne.s32.totalorder %s35, %s38
      %p47 = scmp.eq.s32.totalorder %s30, 1
      %p48 = por %p46, %p47
      %p49 = scmp.ne.s32.totalorder %s38, %s39
      %p50 = scmp.eq.s32.totalorder %s30, 0
      %p51 = por %p49, %p50
      %p52 = scmp.ne.s32.totalorder %s38, %s39
      %p53 = scmp.eq.s32.totalorder %s31, 1
      %p54 = por %p52, %p53
      %p56 = scmp.ne.s32.totalorder %s39, %s55
      %p57 = scmp.eq.s32.totalorder %s31, 0
      %p58 = por %p56, %p57
      %s59 = ssub.s32 %s25, %s32
      %p60 = scmp.eq.s32.totalorder %s59, 0
      %s62 = sadd.s32 %s61, 1
      %s63 = scalar_select %p60, %s61, %s62
      %p66 = pneg %p60
      %p67 = scmp.eq.s32.totalorder %s25, 1
      %p68 = por %p66, %p67
      %p69 = scmp.ne.s32.totalorder %s61, %s64
      %p70 = scmp.eq.s32.totalorder %s25, 0
      %p71 = por %p69, %p70
      %p72 = scmp.ne.s32.totalorder %s61, %s64
      %p73 = scmp.eq.s32.totalorder %s30, 1
      %p74 = por %p72, %p73
      %p75 = scmp.ne.s32.totalorder %s64, %s65
      %p76 = scmp.eq.s32.totalorder %s30, 0
      %p77 = por %p75, %p76
      %p78 = scmp.ne.s32.totalorder %s64, %s65
      %p79 = scmp.eq.s32.totalorder %s31, 1
      %p80 = por %p78, %p79
      %p82 = scmp.ne.s32.totalorder %s65, %s81
      %p83 = scmp.eq.s32.totalorder %s31, 0
      %p84 = por %p82, %p83
      %s85 = ssub.s32 %s25, %s32
      %p86 = scmp.eq.s32.totalorder %s85, 0
      %s88 = sadd.s32 %s87, 1
      %s89 = scalar_select %p86, %s87, %s88
      %p92 = pneg %p86
      %p93 = scmp.eq.s32.totalorder %s25, 1
      %p94 = por %p92, %p93
      %p95 = scmp.ne.s32.totalorder %s87, %s90
      %p96 = scmp.eq.s32.totalorder %s25, 0
      %p97 = por %p95, %p96
      %p98 = scmp.ne.s32.totalorder %s87, %s90
      %p99 = scmp.eq.s32.totalorder %s30, 1
      %p100 = por %p98, %p99
      %p101 = scmp.ne.s32.totalorder %s90, %s91
      %p102 = scmp.eq.s32.totalorder %s30, 0
      %p103 = por %p101, %p102
      %p104 = scmp.ne.s32.totalorder %s90, %s91
      %p105 = scmp.eq.s32.totalorder %s31, 1
      %p106 = por %p104, %p105
      %p108 = scmp.ne.s32.totalorder %s91, %s107
      %p109 = scmp.eq.s32.totalorder %s31, 0
      %p110 = por %p108, %p109
      %s111 = ssub.s32 %s25, %s32
      %p112 = scmp.eq.s32.totalorder %s111, 0
      %s114 = sadd.s32 %s113, 1
      %s115 = scalar_select %p112, %s113, %s114
      %p118 = pneg %p112
      %p119 = scmp.eq.s32.totalorder %s25, 1
      %p120 = por %p118, %p119
      %p121 = scmp.ne.s32.totalorder %s113, %s116
      %p122 = scmp.eq.s32.totalorder %s25, 0
      %p123 = por %p121, %p122
      %p124 = scmp.ne.s32.totalorder %s113, %s116
      %p125 = scmp.eq.s32.totalorder %s30, 1
      %p126 = por %p124, %p125
      %p127 = scmp.ne.s32.totalorder %s116, %s117
      %p128 = scmp.eq.s32.totalorder %s30, 0
      %p129 = por %p127, %p128
      %p130 = scmp.ne.s32.totalorder %s116, %s117
      %p131 = scmp.eq.s32.totalorder %s31, 1
      %p132 = por %p130, %p131
      %p134 = scmp.ne.s32.totalorder %s117, %s133
      %p135 = scmp.eq.s32.totalorder %s31, 0
      %p136 = por %p134, %p135
      %s138 = sadd.s32 %s137, 1
      %p141 = scmp.eq.s32.totalorder %s25, 1
      %p142 = scmp.ne.s32.totalorder %s137, %s139
      %p143 = scmp.eq.s32.totalorder %s25, 0
      %p144 = por %p142, %p143
      %p145 = scmp.ne.s32.totalorder %s137, %s139
      %p146 = scmp.eq.s32.totalorder %s30, 1
      %p147 = por %p145, %p146
      %p148 = scmp.ne.s32.totalorder %s139, %s140
      %p149 = scmp.eq.s32.totalorder %s30, 0
      %p150 = por %p148, %p149
      %p151 = scmp.ne.s32.totalorder %s139, %s140
      %p152 = scmp.eq.s32.totalorder %s31, 1
      %p153 = por %p151, %p152
      %p155 = scmp.ne.s32.totalorder %s140, %s154
      %p156 = scmp.eq.s32.totalorder %s31, 0
      %p157 = por %p155, %p156
      %s159 = sadd.s32 %s158, 1
      %p162 = scmp.eq.s32.totalorder %s25, 1
      %p163 = scmp.ne.s32.totalorder %s158, %s160
      %p164 = scmp.eq.s32.totalorder %s25, 0
      %p165 = por %p163, %p164
      %p166 = scmp.ne.s32.totalorder %s158, %s160
      %p167 = scmp.eq.s32.totalorder %s30, 1
      %p168 = por %p166, %p167
      %p169 = scmp.ne.s32.totalorder %s160, %s161
      %p170 = scmp.eq.s32.totalorder %s30, 0
      %p171 = por %p169, %p170
      %p172 = scmp.ne.s32.totalorder %s160, %s161
      %p173 = scmp.eq.s32.totalorder %s31, 1
      %p174 = por %p172, %p173
      %p176 = scmp.ne.s32.totalorder %s161, %s175
      %p177 = scmp.eq.s32.totalorder %s31, 0
      %p178 = por %p176, %p177
      %s180 = sadd.s32 %s179, 1
      %p183 = scmp.eq.s32.totalorder %s25, 1
      %p184 = scmp.ne.s32.totalorder %s179, %s181
      %p185 = scmp.eq.s32.totalorder %s25, 0
      %p186 = por %p184, %p185
      %p187 = scmp.ne.s32.totalorder %s179, %s181
      %p188 = scmp.eq.s32.totalorder %s30, 1
      %p189 = por %p187, %p188
      %p190 = scmp.ne.s32.totalorder %s181, %s182
      %p191 = scmp.eq.s32.totalorder %s30, 0
      %p192 = por %p190, %p191
      %p193 = scmp.ne.s32.totalorder %s181, %s182
      %p194 = scmp.eq.s32.totalorder %s31, 1
      %p195 = por %p193, %p194
      %p197 = scmp.ne.s32.totalorder %s182, %s196
      %p198 = scmp.eq.s32.totalorder %s31, 0
      %p199 = por %p197, %p198
      %s201 = sadd.s32 %s200, 1
      %p204 = scmp.eq.s32.totalorder %s25, 1
      %p205 = scmp.ne.s32.totalorder %s200, %s202
      %p206 = scmp.eq.s32.totalorder %s25, 0
      %p207 = por %p205, %p206
      %p208 = scmp.ne.s32.totalorder %s200, %s202
      %p209 = scmp.eq.s32.totalorder %s30, 1
      %p210 = por %p208, %p209
      %p211 = scmp.ne.s32.totalorder %s202, %s203
      %p212 = scmp.eq.s32.totalorder %s30, 0
      %p213 = por %p211, %p212
      %p214 = scmp.ne.s32.totalorder %s202, %s203
      %p215 = scmp.eq.s32.totalorder %s31, 1
      %p216 = por %p214, %p215
      %p218 = scmp.ne.s32.totalorder %s203, %s217
      %p219 = scmp.eq.s32.totalorder %s31, 0
      %p220 = por %p218, %p219
      %s221 = ssub.s32 %s25, %s32
      %p222 = scmp.eq.s32.totalorder %s221, 0
      %s224 = sadd.s32 %s223, 1
      %s225 = scalar_select %p222, %s223, %s224
      %p228 = pneg %p222
      %p229 = scmp.eq.s32.totalorder %s25, 1
      %p230 = por %p228, %p229
      %p231 = scmp.ne.s32.totalorder %s223, %s226
      %p232 = scmp.eq.s32.totalorder %s25, 0
      %p233 = por %p231, %p232
      %p234 = scmp.ne.s32.totalorder %s223, %s226
      %p235 = scmp.eq.s32.totalorder %s30, 1
      %p236 = por %p234, %p235
      %p237 = scmp.ne.s32.totalorder %s226, %s227
      %p238 = scmp.eq.s32.totalorder %s30, 0
      %p239 = por %p237, %p238
      %p240 = scmp.ne.s32.totalorder %s226, %s227
      %p241 = scmp.eq.s32.totalorder %s31, 1
      %p242 = por %p240, %p241
      %p244 = scmp.ne.s32.totalorder %s227, %s243
      %p245 = scmp.eq.s32.totalorder %s31, 0
      %p246 = por %p244, %p245
      %p247 = scmp.le.s32.totalorder 1, %s25
      %p248 = scmp.lt.s32.totalorder %s25, 3
      %p249 = pnand %p247, %p248
      %p250 = pneg %p249
      // Predicated region
      $region9: #{tpu_custom_call.1} parent=5 // pred_check
        _
      $region10: #{tpu_custom_call.1} parent=5 // pred_check_branch
        %252 = sbr.rel (%p249) target = $region12
      $region11: #{tpu_custom_call.1} parent=5 // pred_region
        %s253 = ssub.s32 %s25, 1
        // Predicated region
        $region13: #{tpu_custom_call.1} parent=11 // pred_check
          %p254 = pneg %p150
        $region14: #{tpu_custom_call.1} parent=11 // pred_check_branch
          %256 = sbr.rel (%p254) target = $region16
        $region15: #{tpu_custom_call.1} parent=11 // pred_region
          %258 = vsyncadd [#allocation6], 0
          %s259 = sshll.u32 %s4, 4
          %s260 = int_to_ptr.hbm [resolvable:$true] %s259
          %s261 = sshll.u32 [#allocation7], 4
          %s262 = int_to_ptr.vmem [resolvable:$true] %s261
          %267 = dma.hbm_to_vmem [thread:$0]  %s260, 512, %s262, [#allocation6], 128, 128, 8
        $region16: #{tpu_custom_call.1} parent=11 // pred_fallthru
          _
        // Predicated region
        $region17: #{tpu_custom_call.1} parent=11 // pred_check
          %p268 = pneg %p171
        $region18: #{tpu_custom_call.1} parent=11 // pred_check_branch
          %270 = sbr.rel (%p268) target = $region20
        $region19: #{tpu_custom_call.1} parent=11 // pred_region
          %272 = vsyncadd [#allocation9], 0
          %s273 = sshll.u32 %s5, 4
          %s274 = int_to_ptr.hbm [resolvable:$true] %s273
          %s275 = sshll.u32 [#allocation8], 4
          %s276 = int_to_ptr.vmem [resolvable:$true] %s275
          %281 = dma.hbm_to_vmem [thread:$0]  %s274, 512, %s276, [#allocation9], 128, 128, 8
        $region20: #{tpu_custom_call.1} parent=11 // pred_fallthru
          _
        // Predicated region
        $region21: #{tpu_custom_call.1} parent=11 // pred_check
          %p282 = pneg %p192
        $region22: #{tpu_custom_call.1} parent=11 // pred_check_branch
          %284 = sbr.rel (%p282) target = $region24
        $region23: #{tpu_custom_call.1} parent=11 // pred_region
          %286 = vsyncadd [#allocation9], 0
          %s287 = sshll.u32 %s6, 4
          %s288 = int_to_ptr.hbm [resolvable:$true] %s287
          %s289 = sshll.u32 [#allocation10], 4
          %s290 = int_to_ptr.vmem [resolvable:$true] %s289
          %295 = dma.hbm_to_vmem [thread:$0]  %s288, 512, %s290, [#allocation9], 128, 128, 8
        $region24: #{tpu_custom_call.1} parent=11 // pred_fallthru
          _
        // Predicated region
        $region25: #{tpu_custom_call.1} parent=11 // pred_check
          %p296 = pneg %p213
        $region26: #{tpu_custom_call.1} parent=11 // pred_check_branch
          %298 = sbr.rel (%p296) target = $region28
        $region27: #{tpu_custom_call.1} parent=11 // pred_region
          %300 = vsyncadd [#allocation12], 0
          %s301 = sshll.u32 %s7, 4
          %s302 = int_to_ptr.hbm [resolvable:$true] %s301
          %s303 = sshll.u32 [#allocation11], 4
          %s304 = int_to_ptr.vmem [resolvable:$true] %s303
          %309 = dma.hbm_to_vmem [thread:$0]  %s302, 512, %s304, [#allocation12], 128, 128, 8
        $region28: #{tpu_custom_call.1} parent=11 // pred_fallthru
          _
      $region12: #{tpu_custom_call.1} parent=5 // pred_fallthru
        _
      %p310 = scmp.lt.s32.totalorder %s25, 2
      // Predicated region
      $region29: #{tpu_custom_call.1} parent=5 // pred_check
        %p311 = pneg %p310
      $region30: #{tpu_custom_call.1} parent=5 // pred_check_branch
        %313 = sbr.rel (%p311) target = $region32
      $region31: #{tpu_custom_call.1} parent=5 // pred_region
        // Predicated region
        $region33: #{tpu_custom_call.1} parent=31 // pred_check
          %p314 = pneg %p45
        $region34: #{tpu_custom_call.1} parent=31 // pred_check_branch
          %316 = sbr.rel (%p314) target = $region36
        $region35: #{tpu_custom_call.1} parent=31 // pred_region
          %p317 = scmp.lt.s32.totalorder %s25, 1
          %s318 = scalar_select %p317, %s25, 1
          %s319 = smul.addr %s318, 8
          %s320 = scalar_lea.vmem %s0, %s319
        $region36: #{tpu_custom_call.1} parent=31 // pred_fallthru
          _
        // Predicated region
        $region37: #{tpu_custom_call.1} parent=31 // pred_check
          %p321 = pneg %p71
        $region38: #{tpu_custom_call.1} parent=31 // pred_check_branch
          %323 = sbr.rel (%p321) target = $region40
        $region39: #{tpu_custom_call.1} parent=31 // pred_region
          %s324 = sand.u32 %s61, 1
          %s325 = scalar_lea.sflag [#allocation3], %s324
          %s326 = sand.u32 %s61, 1
          %s327 = smul.addr %s326, 8
          %s328 = scalar_lea.vmem [#allocation2], %s327
          %330 = vsyncadd %s325, 0
          %s331 = smul.addr %s25, 8
          %s332 = scalar_lea.hbm %s1, %s331
          %s334 = sshll.u32 %s332, 4
          %s335 = int_to_ptr.hbm [resolvable:$true] %s334
          %s336 = sshll.u32 %s328, 4
          %s337 = int_to_ptr.vmem [resolvable:$true] %s336
          %339 = dma.hbm_to_vmem [thread:$0]  %s335, 128, %s337, %s325
        $region40: #{tpu_custom_call.1} parent=31 // pred_fallthru
          _
        // Predicated region
        $region41: #{tpu_custom_call.1} parent=31 // pred_check
          %p340 = pneg %p97
        $region42: #{tpu_custom_call.1} parent=31 // pred_check_branch
          %342 = sbr.rel (%p340) target = $region44
        $region43: #{tpu_custom_call.1} parent=31 // pred_region
          %s343 = sand.u32 %s25, 1
          %s344 = scalar_lea.sflag [#allocation6], %s343
          %s345 = sand.u32 %s87, 1
          %s346 = smul.addr %s345, 8
          %s347 = scalar_lea.vmem [#allocation5], %s346
          %349 = vsyncadd %s344, 0
          %s350 = smul.addr %s25, 8
          %s351 = scalar_lea.hbm %s2, %s350
          %s353 = sshll.u32 %s351, 4
          %s354 = int_to_ptr.hbm [resolvable:$true] %s353
          %s355 = sshll.u32 %s347, 4
          %s356 = int_to_ptr.vmem [resolvable:$true] %s355
          %358 = dma.hbm_to_vmem [thread:$0]  %s354, 128, %s356, %s344
        $region44: #{tpu_custom_call.1} parent=31 // pred_fallthru
          _
        // Predicated region
        $region45: #{tpu_custom_call.1} parent=31 // pred_check
          %p359 = pneg %p123
        $region46: #{tpu_custom_call.1} parent=31 // pred_check_branch
          %361 = sbr.rel (%p359) target = $region48
        $region47: #{tpu_custom_call.1} parent=31 // pred_region
          %p362 = scmp.lt.s32.totalorder %s25, 1
          %s363 = scalar_select %p362, %s25, 1
          %s364 = smul.addr %s363, 8
          %s365 = scalar_lea.vmem %s3, %s364
        $region48: #{tpu_custom_call.1} parent=31 // pred_fallthru
          _
      $region32: #{tpu_custom_call.1} parent=5 // pred_fallthru
        _
      %p366 = scmp.le.s32.totalorder 1, %s25
      %p367 = scmp.lt.s32.totalorder %s25, 3
      %p368 = pnand %p366, %p367
      %p369 = pneg %p368
      // Predicated region
      $region49: #{tpu_custom_call.1} parent=5 // pred_check
        _
      $region50: #{tpu_custom_call.1} parent=5 // pred_check_branch
        %371 = sbr.rel (%p368) target = $region52
      $region51: #{tpu_custom_call.1} parent=5 // pred_region
        %s372 = ssub.s32 %s25, 1
        %s373 = sand.u32 %s64, 1
        %s374 = scalar_lea.sflag [#allocation3], %s373
        %s375 = sand.u32 %s64, 1
        %s376 = smul.addr %s375, 8
        %s377 = scalar_lea.vmem [#allocation2], %s376
        // Predicated region
        $region53: #{tpu_custom_call.1} parent=51 // pred_check
          %p378 = pneg %p77
        $region54: #{tpu_custom_call.1} parent=51 // pred_check_branch
          %380 = sbr.rel (%p378) target = $region56
        $region55: #{tpu_custom_call.1} parent=51 // pred_region
          %382 = dma.done %s374, 128
        $region56: #{tpu_custom_call.1} parent=51 // pred_fallthru
          _
        %s383 = sand.u32 %s30, 1
        %s384 = scalar_lea.sflag [#allocation6], %s383
        %s385 = sand.u32 %s90, 1
        %s386 = smul.addr %s385, 8
        %s387 = scalar_lea.vmem [#allocation5], %s386
        // Predicated region
        $region57: #{tpu_custom_call.1} parent=51 // pred_check
          %p388 = pneg %p103
        $region58: #{tpu_custom_call.1} parent=51 // pred_check_branch
          %390 = sbr.rel (%p388) target = $region60
        $region59: #{tpu_custom_call.1} parent=51 // pred_region
          %392 = dma.done %s384, 128
        $region60: #{tpu_custom_call.1} parent=51 // pred_fallthru
          _
        // Predicated region
        $region61: #{tpu_custom_call.1} parent=51 // pred_check
          %p393 = pneg %p150
        $region62: #{tpu_custom_call.1} parent=51 // pred_check_branch
          %395 = sbr.rel (%p393) target = $region64
        $region63: #{tpu_custom_call.1} parent=51 // pred_region
          %397 = dma.done [#allocation6], 512
        $region64: #{tpu_custom_call.1} parent=51 // pred_fallthru
          _
        // Predicated region
        $region65: #{tpu_custom_call.1} parent=51 // pred_check
          %p398 = pneg %p171
        $region66: #{tpu_custom_call.1} parent=51 // pred_check_branch
          %400 = sbr.rel (%p398) target = $region68
        $region67: #{tpu_custom_call.1} parent=51 // pred_region
          %402 = dma.done [#allocation9], 512
        $region68: #{tpu_custom_call.1} parent=51 // pred_fallthru
          _
        // Predicated region
        $region69: #{tpu_custom_call.1} parent=51 // pred_check
          %p403 = pneg %p192
        $region70: #{tpu_custom_call.1} parent=51 // pred_check_branch
          %405 = sbr.rel (%p403) target = $region72
        $region71: #{tpu_custom_call.1} parent=51 // pred_region
          %407 = dma.done [#allocation9], 512
        $region72: #{tpu_custom_call.1} parent=51 // pred_fallthru
          _
        // Predicated region
        $region73: #{tpu_custom_call.1} parent=51 // pred_check
          %p408 = pneg %p213
        $region74: #{tpu_custom_call.1} parent=51 // pred_check_branch
          %410 = sbr.rel (%p408) target = $region76
        $region75: #{tpu_custom_call.1} parent=51 // pred_region
          %412 = dma.done [#allocation12], 512
        $region76: #{tpu_custom_call.1} parent=51 // pred_fallthru
          _
        %p413 = scmp.lt.s32.totalorder %s30, 1
        %s414 = scalar_select %p413, %s30, 1
        %s415 = smul.addr %s414, 8
        %s416 = scalar_lea.vmem %s0, %s415
        %p417 = pneg %p51
        %p418 = pneg %p48
        %s419 = sand.u32 %s64, 1
        %s420 = scalar_lea.sflag [#allocation3], %s419
        %s421 = sand.u32 %s64, 1
        %s422 = smul.addr %s421, 8
        %s423 = scalar_lea.vmem [#allocation2], %s422
        %p424 = pneg %p77
        %p425 = pneg %p74
        %s426 = sand.u32 %s30, 1
        %s427 = scalar_lea.sflag [#allocation6], %s426
        %s428 = sand.u32 %s90, 1
        %s429 = smul.addr %s428, 8
        %s430 = scalar_lea.vmem [#allocation5], %s429
        %p431 = pneg %p103
        %p432 = pneg %p100
        %p433 = scmp.lt.s32.totalorder %s30, 1
        %s434 = scalar_select %p433, %s30, 1
        %s435 = smul.addr %s434, 8
        %s436 = scalar_lea.vmem %s3, %s435
        %p437 = pneg %p129
        %p438 = pneg %p126
        %p439 = pneg %p150
        %p440 = pneg %p147
        %p441 = pneg %p171
        %p442 = pneg %p168
        %p443 = pneg %p192
        %p444 = pneg %p189
        %p445 = pneg %p213
        %p446 = pneg %p210
        %p447 = pneg %p239
        %p448 = pneg %p236
        %s449 = sand.u32 %s226, 1
        %s450 = scalar_lea.sflag [#allocation4], %s449
        %s451 = sand.u32 %s226, 1
        %s452 = smul.addr %s451, 8
        %s453 = scalar_lea.vmem [#allocation13], %s452
        %p454 = scmp.lt.s32.totalorder %s30, 1
        %s455 = scalar_select %p454, %s30, 1
        %s456 = smul.addr %s455, 8
        %s457 = scalar_lea.vmem %s0, %s456
        %p458 = scmp.lt.s32.totalorder %s30, 1
        %s459 = scalar_select %p458, %s30, 1
        %s460 = smul.addr %s459, 8
        %s461 = scalar_lea.vmem %s3, %s460
        %v462 = vld [vmem:[%s457] sm:$0xff]
        %v463 = vld [vmem:[%s377] sm:$0xff]
        %v464 = vld [vmem:[%s387] sm:$0xff]
        %v465 = vld [vmem:[%s461] sm:$0xff]
        %v466 = vld [vmem:[#allocation7] sm:$0xff]
        %v467 = vld [vmem:[#allocation7 + $0x8] sm:$0xff]
        %v468 = vld [vmem:[#allocation7 + $0x10] sm:$0xff]
        %v469 = vld [vmem:[#allocation7 + $0x18] sm:$0xff]
        %vm470 = vcmask 261120
        %v472 = vsel %vm470, %v462, 0
        %v475 = vsel %vm470, %v466, 0
        %v478 = vsel %vm470, %v467, 0
        %v481 = vsel %vm470, %v468, 0
        %v484 = vsel %vm470, %v469, 0
        %486 = vmatpush.xpose.msra.mxu0 0.0
        %487 = vmatpush.xpose.msra.mxu0 0.0
        %488 = vmatpush.xpose.msra.mxu0 0.0
        %489 = vmatpush.xpose.msra.mxu0 0.0
        %490 = vmatpush.xpose.msra.mxu0 0.0
        %491 = vmatpush.xpose.msra.mxu0 0.0
        %492 = vmatpush.xpose.msra.mxu0 0.0
        %493 = vmatpush.xpose.msra.mxu0 0.0
        %494 = vmatpush.xpose.msra.mxu0 0.0
        %495 = vmatpush.xpose.msra.mxu0 0.0
        %496 = vmatpush.xpose.msra.mxu0 0.0
        %497 = vmatpush.xpose.msra.mxu0 0.0
        %498 = vmatpush.xpose.msra.mxu0 %v484
        %499 = vmatpush.xpose.msra.mxu0 %v481
        %500 = vmatpush.xpose.msra.mxu0 %v478
        %501 = vmatpush.xpose.msra.mxu0 %v475
        %502 = vmatmul.f32.gmra.mxu0 %v472
        %v503 = vpop.f32.mrf.mxu0
        %v504 = vadd.f32 0.0, %v503
        %505 = vdwg.mxu0
        %v506 = vld [vmem:[#allocation8] sm:$0xff]
        %v507 = vld [vmem:[#allocation8 + $0x8] sm:$0xff]
        %v508 = vld [vmem:[#allocation8 + $0x10] sm:$0xff]
        %v509 = vld [vmem:[#allocation8 + $0x18] sm:$0xff]
        %v511 = vsel %vm470, %v463, 0
        %v514 = vsel %vm470, %v506, 0
        %v517 = vsel %vm470, %v507, 0
        %v520 = vsel %vm470, %v508, 0
        %v523 = vsel %vm470, %v509, 0
        %525 = vmatpush.xpose.msra.mxu0 0.0
        %526 = vmatpush.xpose.msra.mxu0 0.0
        %527 = vmatpush.xpose.msra.mxu0 0.0
        %528 = vmatpush.xpose.msra.mxu0 0.0
        %529 = vmatpush.xpose.msra.mxu0 0.0
        %530 = vmatpush.xpose.msra.mxu0 0.0
        %531 = vmatpush.xpose.msra.mxu0 0.0
        %532 = vmatpush.xpose.msra.mxu0 0.0
        %533 = vmatpush.xpose.msra.mxu0 0.0
        %534 = vmatpush.xpose.msra.mxu0 0.0
        %535 = vmatpush.xpose.msra.mxu0 0.0
        %536 = vmatpush.xpose.msra.mxu0 0.0
        %537 = vmatpush.xpose.msra.mxu0 %v523
        %538 = vmatpush.xpose.msra.mxu0 %v520
        %539 = vmatpush.xpose.msra.mxu0 %v517
        %540 = vmatpush.xpose.msra.mxu0 %v514
        %541 = vmatmul.f32.gmra.mxu0 %v511
        %v542 = vpop.f32.mrf.mxu0
        %v543 = vadd.f32 0.0, %v542
        %544 = vdwg.mxu0
        %v545 = vld [vmem:[#allocation10] sm:$0xff]
        %v546 = vld [vmem:[#allocation10 + $0x8] sm:$0xff]
        %v547 = vld [vmem:[#allocation10 + $0x10] sm:$0xff]
        %v548 = vld [vmem:[#allocation10 + $0x18] sm:$0xff]
        %v550 = vsel %vm470, %v464, 0
        %v553 = vsel %vm470, %v545, 0
        %v556 = vsel %vm470, %v546, 0
        %v559 = vsel %vm470, %v547, 0
        %v562 = vsel %vm470, %v548, 0
        %564 = vmatpush.xpose.msra.mxu0 0.0
        %565 = vmatpush.xpose.msra.mxu0 0.0
        %566 = vmatpush.xpose.msra.mxu0 0.0
        %567 = vmatpush.xpose.msra.mxu0 0.0
        %568 = vmatpush.xpose.msra.mxu0 0.0
        %569 = vmatpush.xpose.msra.mxu0 0.0
        %570 = vmatpush.xpose.msra.mxu0 0.0
        %571 = vmatpush.xpose.msra.mxu0 0.0
        %572 = vmatpush.xpose.msra.mxu0 0.0
        %573 = vmatpush.xpose.msra.mxu0 0.0
        %574 = vmatpush.xpose.msra.mxu0 0.0
        %575 = vmatpush.xpose.msra.mxu0 0.0
        %576 = vmatpush.xpose.msra.mxu0 %v562
        %577 = vmatpush.xpose.msra.mxu0 %v559
        %578 = vmatpush.xpose.msra.mxu0 %v556
        %579 = vmatpush.xpose.msra.mxu0 %v553
        %580 = vmatmul.f32.gmra.mxu0 %v550
        %v581 = vpop.f32.mrf.mxu0
        %v582 = vadd.f32 0.0, %v581
        %583 = vdwg.mxu0
        %v584 = vlaneseq
        %v585 = vand.u32 %v584, 127
        %586 = vset.pattern.permute.xlu0 0
        %587 = vperm.xlu0 %586, %v465
        %v588 = vpop.permute.xlu0 %587
        %vm589 = vcmp.lt.s32.totalorder %v585, %v588
        %vm590 = vcmask 64512
        %v592 = vsel %vm590, %v504, 0
        %v595 = vsel %vm590, %v543, 0
        %597 = vmatpush.xpose.msra.mxu0 0.0
        %598 = vmatpush.xpose.msra.mxu0 0.0
        %599 = vmatpush.xpose.msra.mxu0 0.0
        %600 = vmatpush.xpose.msra.mxu0 0.0
        %601 = vmatpush.xpose.msra.mxu0 0.0
        %602 = vmatpush.xpose.msra.mxu0 0.0
        %603 = vmatpush.xpose.msra.mxu0 0.0
        %604 = vmatpush.xpose.msra.mxu0 0.0
        %605 = vmatpush.xpose.msra.mxu0 0.0
        %606 = vmatpush.xpose.msra.mxu0 0.0
        %607 = vmatpush.xpose.msra.mxu0 0.0
        %608 = vmatpush.xpose.msra.mxu0 0.0
        %609 = vmatpush.xpose.msra.mxu0 0.0
        %610 = vmatpush.xpose.msra.mxu0 0.0
        %611 = vmatpush.xpose.msra.mxu0 0.0
        %612 = vmatpush.xpose.msra.mxu0 %v595
        %613 = vmatmul.f32.gmra.mxu0 %v592
        %v614 = vpop.f32.mrf.mxu0
        %v615 = vadd.f32 0.0, %v614
        %616 = vdwg.mxu0
        %v617 = vmul.f32 %v615, 0.35355338
        %v618 = vsel %vm589, %v617, -1000000.0
        %v619 = vsel %vm590, %v618, -inf
        %620 = vmax.xlane.f32.xlu0 %v619
        %v621 = vpop.xlane.xlu0 %620
        %v622 = vsub.f32 %v618, %v621
        %v623 = vmul.f32 %v622, 1.442695
        %v624 = vpow.pop %v623
        %v625 = vsel %vm590, %v624, 0.0
        %626 = vadd.xlane.f32.xlu0 %v625
        %v627 = vpop.xlane.xlu0 %626
        %v628 = vrcp.pop %v627
        %v629 = vmul.f32 %v624, %v628
        %v631 = vsel %vm590, %v629, 0
        %633 = vmatpush.msra.mxu0 0.0
        %634 = vmatpush.msra.mxu0 0.0
        %635 = vmatpush.msra.mxu0 0.0
        %636 = vmatpush.msra.mxu0 0.0
        %637 = vmatpush.msra.mxu0 0.0
        %638 = vmatpush.msra.mxu0 0.0
        %639 = vmatpush.msra.mxu0 0.0
        %640 = vmatpush.msra.mxu0 0.0
        %641 = vmatpush.msra.mxu0 0.0
        %642 = vmatpush.msra.mxu0 0.0
        %643 = vmatpush.msra.mxu0 0.0
        %644 = vmatpush.msra.mxu0 0.0
        %645 = vmatpush.msra.mxu0 0.0
        %646 = vmatpush.msra.mxu0 0.0
        %647 = vmatpush.msra.mxu0 0.0
        %648 = vmatpush.msra.mxu0 %v582
        %649 = vmatmul.f32.gmra.mxu0 %v631
        %v650 = vpop.f32.mrf.mxu0
        %v651 = vadd.f32 0.0, %v650
        %652 = vdwg.mxu0
        %653 = vrot.lane.b32.xlu0 %v504, 120
        %v654 = vpop.permute.xlu0 %653
        %655 = vrot.lane.b32.xlu0 %v543, 120
        %v656 = vpop.permute.xlu0 %655
        %v657 = vsel %vm590, %v654, 0
        %v659 = vsel %vm590, %v656, 0
        %661 = vmatpush.xpose.msra.mxu0 0.0
        %662 = vmatpush.xpose.msra.mxu0 0.0
        %663 = vmatpush.xpose.msra.mxu0 0.0
        %664 = vmatpush.xpose.msra.mxu0 0.0
        %665 = vmatpush.xpose.msra.mxu0 0.0
        %666 = vmatpush.xpose.msra.mxu0 0.0
        %667 = vmatpush.xpose.msra.mxu0 0.0
        %668 = vmatpush.xpose.msra.mxu0 0.0
        %669 = vmatpush.xpose.msra.mxu0 0.0
        %670 = vmatpush.xpose.msra.mxu0 0.0
        %671 = vmatpush.xpose.msra.mxu0 0.0
        %672 = vmatpush.xpose.msra.mxu0 0.0
        %673 = vmatpush.xpose.msra.mxu0 0.0
        %674 = vmatpush.xpose.msra.mxu0 0.0
        %675 = vmatpush.xpose.msra.mxu0 0.0
        %676 = vmatpush.xpose.msra.mxu0 %v659
        %677 = vmatmul.f32.gmra.mxu0 %v657
        %v678 = vpop.f32.mrf.mxu0
        %v679 = vadd.f32 0.0, %v678
        %680 = vdwg.mxu0
        %v681 = vmul.f32 %v679, 0.35355338
        %v682 = vsel %vm589, %v681, -1000000.0
        %v683 = vsel %vm590, %v682, -inf
        %684 = vmax.xlane.f32.xlu0 %v683
        %v685 = vpop.xlane.xlu0 %684
        %v686 = vsub.f32 %v682, %v685
        %v687 = vmul.f32 %v686, 1.442695
        %v688 = vpow.pop %v687
        %v689 = vsel %vm590, %v688, 0.0
        %690 = vadd.xlane.f32.xlu0 %v689
        %v691 = vpop.xlane.xlu0 %690
        %v692 = vrcp.pop %v691
        %v693 = vmul.f32 %v688, %v692
        %695 = vrot.lane.b32.xlu0 %v582, 120
        %v696 = vpop.permute.xlu0 %695
        %v699 = vsel %vm590, %v693, 0
        %701 = vmatpush.msra.mxu0 0.0
        %702 = vmatpush.msra.mxu0 0.0
        %703 = vmatpush.msra.mxu0 0.0
        %704 = vmatpush.msra.mxu0 0.0
        %705 = vmatpush.msra.mxu0 0.0
        %706 = vmatpush.msra.mxu0 0.0
        %707 = vmatpush.msra.mxu0 0.0
        %708 = vmatpush.msra.mxu0 0.0
        %709 = vmatpush.msra.mxu0 0.0
        %710 = vmatpush.msra.mxu0 0.0
        %711 = vmatpush.msra.mxu0 0.0
        %712 = vmatpush.msra.mxu0 0.0
        %713 = vmatpush.msra.mxu0 0.0
        %714 = vmatpush.msra.mxu0 0.0
        %715 = vmatpush.msra.mxu0 0.0
        %716 = vmatpush.msra.mxu0 %v696
        %717 = vmatmul.f32.gmra.mxu0 %v699
        %v718 = vpop.f32.mrf.mxu0
        %v719 = vadd.f32 0.0, %v718
        %720 = vdwg.mxu0
        %721 = vrot.lane.b32.xlu0 %v504, 112
        %v722 = vpop.permute.xlu0 %721
        %723 = vrot.lane.b32.xlu0 %v543, 112
        %v724 = vpop.permute.xlu0 %723
        %v725 = vsel %vm590, %v722, 0
        %v727 = vsel %vm590, %v724, 0
        %729 = vmatpush.xpose.msra.mxu0 0.0
        %730 = vmatpush.xpose.msra.mxu0 0.0
        %731 = vmatpush.xpose.msra.mxu0 0.0
        %732 = vmatpush.xpose.msra.mxu0 0.0
        %733 = vmatpush.xpose.msra.mxu0 0.0
        %734 = vmatpush.xpose.msra.mxu0 0.0
        %735 = vmatpush.xpose.msra.mxu0 0.0
        %736 = vmatpush.xpose.msra.mxu0 0.0
        %737 = vmatpush.xpose.msra.mxu0 0.0
        %738 = vmatpush.xpose.msra.mxu0 0.0
        %739 = vmatpush.xpose.msra.mxu0 0.0
        %740 = vmatpush.xpose.msra.mxu0 0.0
        %741 = vmatpush.xpose.msra.mxu0 0.0
        %742 = vmatpush.xpose.msra.mxu0 0.0
        %743 = vmatpush.xpose.msra.mxu0 0.0
        %744 = vmatpush.xpose.msra.mxu0 %v727
        %745 = vmatmul.f32.gmra.mxu0 %v725
        %v746 = vpop.f32.mrf.mxu0
        %v747 = vadd.f32 0.0, %v746
        %748 = vdwg.mxu0
        %v749 = vmul.f32 %v747, 0.35355338
        %v750 = vsel %vm589, %v749, -1000000.0
        %v751 = vsel %vm590, %v750, -inf
        %752 = vmax.xlane.f32.xlu0 %v751
        %v753 = vpop.xlane.xlu0 %752
        %v754 = vsub.f32 %v750, %v753
        %v755 = vmul.f32 %v754, 1.442695
        %v756 = vpow.pop %v755
        %v757 = vsel %vm590, %v756, 0.0
        %758 = vadd.xlane.f32.xlu0 %v757
        %v759 = vpop.xlane.xlu0 %758
        %v760 = vrcp.pop %v759
        %v761 = vmul.f32 %v756, %v760
        %762 = vrot.lane.b32.xlu0 %v582, 112
        %v763 = vpop.permute.xlu0 %762
        %v766 = vsel %vm590, %v761, 0
        %768 = vmatpush.msra.mxu0 0.0
        %769 = vmatpush.msra.mxu0 0.0
        %770 = vmatpush.msra.mxu0 0.0
        %771 = vmatpush.msra.mxu0 0.0
        %772 = vmatpush.msra.mxu0 0.0
        %773 = vmatpush.msra.mxu0 0.0
        %774 = vmatpush.msra.mxu0 0.0
        %775 = vmatpush.msra.mxu0 0.0
        %776 = vmatpush.msra.mxu0 0.0
        %777 = vmatpush.msra.mxu0 0.0
        %778 = vmatpush.msra.mxu0 0.0
        %779 = vmatpush.msra.mxu0 0.0
        %780 = vmatpush.msra.mxu0 0.0
        %781 = vmatpush.msra.mxu0 0.0
        %782 = vmatpush.msra.mxu0 0.0
        %783 = vmatpush.msra.mxu0 %v763
        %784 = vmatmul.f32.gmra.mxu0 %v766
        %v785 = vpop.f32.mrf.mxu0
        %v786 = vadd.f32 0.0, %v785
        %787 = vdwg.mxu0
        %788 = vrot.lane.b32.xlu0 %v504, 104
        %v789 = vpop.permute.xlu0 %788
        %790 = vrot.lane.b32.xlu0 %v543, 104
        %v791 = vpop.permute.xlu0 %790
        %v792 = vsel %vm590, %v789, 0
        %v794 = vsel %vm590, %v791, 0
        %796 = vmatpush.xpose.msra.mxu0 0.0
        %797 = vmatpush.xpose.msra.mxu0 0.0
        %798 = vmatpush.xpose.msra.mxu0 0.0
        %799 = vmatpush.xpose.msra.mxu0 0.0
        %800 = vmatpush.xpose.msra.mxu0 0.0
        %801 = vmatpush.xpose.msra.mxu0 0.0
        %802 = vmatpush.xpose.msra.mxu0 0.0
        %803 = vmatpush.xpose.msra.mxu0 0.0
        %804 = vmatpush.xpose.msra.mxu0 0.0
        %805 = vmatpush.xpose.msra.mxu0 0.0
        %806 = vmatpush.xpose.msra.mxu0 0.0
        %807 = vmatpush.xpose.msra.mxu0 0.0
        %808 = vmatpush.xpose.msra.mxu0 0.0
        %809 = vmatpush.xpose.msra.mxu0 0.0
        %810 = vmatpush.xpose.msra.mxu0 0.0
        %811 = vmatpush.xpose.msra.mxu0 %v794
        %812 = vmatmul.f32.gmra.mxu0 %v792
        %v813 = vpop.f32.mrf.mxu0
        %v814 = vadd.f32 0.0, %v813
        %815 = vdwg.mxu0
        %v816 = vmul.f32 %v814, 0.35355338
        %v817 = vsel %vm589, %v816, -1000000.0
        %v818 = vsel %vm590, %v817, -inf
        %819 = vmax.xlane.f32.xlu0 %v818
        %v820 = vpop.xlane.xlu0 %819
        %v821 = vsub.f32 %v817, %v820
        %v822 = vmul.f32 %v821, 1.442695
        %v823 = vpow.pop %v822
        %v824 = vsel %vm590, %v823, 0.0
        %825 = vadd.xlane.f32.xlu0 %v824
        %v826 = vpop.xlane.xlu0 %825
        %v827 = vrcp.pop %v826
        %v828 = vmul.f32 %v823, %v827
        %829 = vrot.lane.b32.xlu0 %v582, 104
        %v830 = vpop.permute.xlu0 %829
        %v833 = vsel %vm590, %v828, 0
        %835 = vmatpush.msra.mxu0 0.0
        %836 = vmatpush.msra.mxu0 0.0
        %837 = vmatpush.msra.mxu0 0.0
        %838 = vmatpush.msra.mxu0 0.0
        %839 = vmatpush.msra.mxu0 0.0
        %840 = vmatpush.msra.mxu0 0.0
        %841 = vmatpush.msra.mxu0 0.0
        %842 = vmatpush.msra.mxu0 0.0
        %843 = vmatpush.msra.mxu0 0.0
        %844 = vmatpush.msra.mxu0 0.0
        %845 = vmatpush.msra.mxu0 0.0
        %846 = vmatpush.msra.mxu0 0.0
        %847 = vmatpush.msra.mxu0 0.0
        %848 = vmatpush.msra.mxu0 0.0
        %849 = vmatpush.msra.mxu0 0.0
        %850 = vmatpush.msra.mxu0 %v830
        %851 = vmatmul.f32.gmra.mxu0 %v833
        %v852 = vpop.f32.mrf.mxu0
        %v853 = vadd.f32 0.0, %v852
        %854 = vdwg.mxu0
        %856 = vrot.lane.b32.xlu0 %v719, 8
        %v857 = vpop.permute.xlu0 %856
        %860 = vrot.lane.b32.xlu0 %v786, 16
        %v861 = vpop.permute.xlu0 %860
        %864 = vrot.lane.b32.xlu0 %v853, 24
        %v865 = vpop.permute.xlu0 %864
        %v867 = vsel %vm590, %v651, %v857
        %vm868 = vcmask 130048
        %v869 = vsel %vm868, %v867, %v861
        %vm870 = vcmask 195584
        %v871 = vsel %vm870, %v869, %v865
        %v872 = vld [vmem:[#allocation11] sm:$0xff]
        %v873 = vld [vmem:[#allocation11 + $0x8] sm:$0xff]
        %v874 = vld [vmem:[#allocation11 + $0x10] sm:$0xff]
        %v875 = vld [vmem:[#allocation11 + $0x18] sm:$0xff]
        %v877 = vsel %vm470, %v871, 0
        %v880 = vsel %vm470, %v872, 0
        %v883 = vsel %vm470, %v873, 0
        %v886 = vsel %vm470, %v874, 0
        %v889 = vsel %vm470, %v875, 0
        %891 = vmatpush.xpose.msra.mxu0 0.0
        %892 = vmatpush.xpose.msra.mxu0 0.0
        %893 = vmatpush.xpose.msra.mxu0 0.0
        %894 = vmatpush.xpose.msra.mxu0 0.0
        %895 = vmatpush.xpose.msra.mxu0 0.0
        %896 = vmatpush.xpose.msra.mxu0 0.0
        %897 = vmatpush.xpose.msra.mxu0 0.0
        %898 = vmatpush.xpose.msra.mxu0 0.0
        %899 = vmatpush.xpose.msra.mxu0 0.0
        %900 = vmatpush.xpose.msra.mxu0 0.0
        %901 = vmatpush.xpose.msra.mxu0 0.0
        %902 = vmatpush.xpose.msra.mxu0 0.0
        %903 = vmatpush.xpose.msra.mxu0 %v889
        %904 = vmatpush.xpose.msra.mxu0 %v886
        %905 = vmatpush.xpose.msra.mxu0 %v883
        %906 = vmatpush.xpose.msra.mxu0 %v880
        %907 = vmatmul.f32.gmra.mxu0 %v877
        %v908 = vpop.f32.mrf.mxu0
        %v909 = vadd.f32 0.0, %v908
        %910 = vdwg.mxu0
        %911 = vst.msk [vmem:[%s453] sm:$0xff] %vm470, %v909
        %s912 = sand.u32 %s226, 1
        %s913 = scalar_lea.sflag [#allocation4], %s912
        %s914 = sand.u32 %s226, 1
        %s915 = smul.addr %s914, 8
        %s916 = scalar_lea.vmem [#allocation13], %s915
        // Predicated region
        $region77: #{tpu_custom_call.1} parent=51 // pred_check
          %p917 = pneg %p236
        $region78: #{tpu_custom_call.1} parent=51 // pred_check_branch
          %919 = sbr.rel (%p917) target = $region80
        $region79: #{tpu_custom_call.1} parent=51 // pred_region
          %921 = vsyncadd %s913, 0
          %s922 = smul.addr %s30, 8
          %s923 = scalar_lea.hbm %s8, %s922
          %s925 = sshll.u32 %s916, 4
          %s926 = int_to_ptr.vmem [resolvable:$true] %s925
          %s927 = sshll.u32 %s923, 4
          %s928 = int_to_ptr.hbm [resolvable:$true] %s927
          %930 = dma.vmem_to_hbm [thread:$0]  %s926, 128, %s928, %s913
        $region80: #{tpu_custom_call.1} parent=51 // pred_fallthru
          _
      $region52: #{tpu_custom_call.1} parent=5 // pred_fallthru
        _
      %p931 = scmp.le.s32.totalorder 2, %s25
      // Predicated region
      $region81: #{tpu_custom_call.1} parent=5 // pred_check
        %p932 = pneg %p931
      $region82: #{tpu_custom_call.1} parent=5 // pred_check_branch
        %934 = sbr.rel (%p932) target = $region84
      $region83: #{tpu_custom_call.1} parent=5 // pred_region
        %s935 = ssub.s32 %s25, 2
        // Predicated region
        $region85: #{tpu_custom_call.1} parent=83 // pred_check
          %p936 = pneg %p242
        $region86: #{tpu_custom_call.1} parent=83 // pred_check_branch
          %938 = sbr.rel (%p936) target = $region88
        $region87: #{tpu_custom_call.1} parent=83 // pred_region
          %s939 = sand.u32 %s227, 1
          %s940 = scalar_lea.sflag [#allocation4], %s939
          %s941 = sand.u32 %s227, 1
          %s942 = smul.addr %s941, 8
          %s943 = scalar_lea.vmem [#allocation13], %s942
          %945 = dma.done %s940, 128
        $region88: #{tpu_custom_call.1} parent=83 // pred_fallthru
          _
      $region84: #{tpu_custom_call.1} parent=5 // pred_fallthru
        _
    $region6: #{tpu_custom_call.1} parent=1 // loop_footer
      %s29 = sadd.s32 1, %s25
    $region7: #{tpu_custom_call.1} parent=1 // loop_footer_branch
      %24 = sbr.rel target = $region3
    $region8: #{tpu_custom_call.1} parent=1 // loop_exit
      _
    %946 = vsyncpa [#allocation3], 1
    %s947 = scalar_lea.sflag [#allocation3], 1
    %948 = vsyncpa %s947, 1
    %949 = vsyncpa [#allocation6], 1
    %s950 = scalar_lea.sflag [#allocation6], 1
    %951 = vsyncpa %s950, 1
    %952 = vsyncpa [#allocation9], 1
    %953 = vsyncpa [#allocation12], 1
    %954 = vsyncpa [#allocation4], 1
    %s955 = scalar_lea.sflag [#allocation4], 1
    %956 = vsyncpa %s955, 1

</llo_original>
